<compile_context>
chip_gen: v7x
topology: tpu7x:2x2x1
jax: 0.10.0
libtpu: 0.0.40
codegen_flags: <defaults>
</compile_context>

<pallas_src>
import jax
import jax.numpy as jnp
from jax.experimental import pallas as pl
from jax.experimental.pallas import tpu as pltpu


def _build_pos_enc_mat(time_channels: int, max_len: int = 4000) -> jnp.ndarray:
    """Deterministic replica of the PyTorch __init__ buffer."""
    d_model = time_channels // 4
    pos = jnp.arange(max_len, dtype=jnp.float32)[:, None]            # (max_len, 1)
    i = jnp.arange(d_model // 2, dtype=jnp.float32)[None, :]         # (1, d_model//2)
    angle = pos / jnp.power(10000.0, 2.0 * i / d_model)              # (max_len, d_model//2)
    pe = jnp.zeros((max_len, d_model), dtype=jnp.float32)
    pe = pe.at[:, 0::2].set(jnp.sin(angle))
    pe = pe.at[:, 1::2].set(jnp.cos(angle))
    return pe


def _gather_kernel(steps_ref, table_hbm, out_ref, buf_ref, sem_ref):
    """Gather B table rows from HBM via B overlapped DMAs, then one store."""
    batch = buf_ref.shape[0]
    copies = []
    # Static Python loop: batch is a small compile-time constant; all DMA
    # starts are issued back-to-back so the row fetches overlap.
    for b in range(batch):
        cp = pltpu.make_async_copy(
            table_hbm.at[pl.ds(steps_ref[b], 1), :],   # dynamic row from HBM
            buf_ref.at[pl.ds(b, 1), :],                # static row in VMEM
            sem_ref.at[b],
        )
        cp.start()
        copies.append(cp)
    for cp in copies:
        cp.wait()
    # Single (B, d_model) store -> one output writeback instead of B small ones.
    out_ref[...] = buf_ref[...]


def time_embedding_forward(pos_enc_mat: jnp.ndarray,
                           diffusion_step: jnp.ndarray) -> jnp.ndarray:
    """Equivalent of TimeEmbedding.forward: pos_enc_mat[diffusion_step]."""
    max_len, d_model = pos_enc_mat.shape
    (batch,) = diffusion_step.shape
    # Clamp to valid range so the data-dependent DMA can never go OOB.
    steps = jnp.clip(diffusion_step.astype(jnp.int32), 0, max_len - 1)

    grid_spec = pltpu.PrefetchScalarGridSpec(
        num_scalar_prefetch=1,            # steps land in SMEM before the grid runs
        grid=(1,),                        # single grid step: no per-row overhead
        in_specs=[
            pl.BlockSpec(memory_space=pl.ANY),   # table stays in HBM, manual DMA
        ],
        out_specs=pl.BlockSpec((batch, d_model), lambda i, steps_ref: (0, 0)),
        scratch_shapes=[
            pltpu.VMEM((batch, d_model), pos_enc_mat.dtype),
            pltpu.SemaphoreType.DMA((batch,)),
        ],
    )

    call = pl.pallas_call(
        _gather_kernel,
        out_shape=jax.ShapeDtypeStruct((batch, d_model), pos_enc_mat.dtype),
        grid_spec=grid_spec,
        compiler_params=pltpu.CompilerParams(
            dimension_semantics=("arbitrary",),
        ),
    )
    return call(steps, pos_enc_mat)


if __name__ == "__main__":
    time_channels = 128            # -> d_model = 32
    max_len = 4000
    batch = 8

    pos_enc_mat = _build_pos_enc_mat(time_channels, max_len)

    key = jax.random.PRNGKey(0)
    diffusion_step = jax.random.randint(key, (batch,), 0, max_len, dtype=jnp.int32)

    out = time_embedding_forward(pos_enc_mat, diffusion_step)
    out = jax.block_until_ready(out)

    # Reference check against plain-JAX gather (same semantics as torch indexing).
    ref = pos_enc_mat[diffusion_step]
    assert out.shape == (batch, time_channels // 4)
    assert jnp.array_equal(out, ref)

    print("KERNEL_OK")
</pallas_src>

<mosaic_0001>
module attributes {stable_mosaic.version = 11 : i64} {
  func.func @_gather_kernel(%arg0: i32, %arg1: memref<8xi32, #tpu.memory_space<smem>>, %arg2: memref<4000x32xf32, #tpu.memory_space<any>>, %arg3: memref<8x32xf32, #tpu.memory_space<vmem>>, %arg4: memref<8x32xf32, #tpu.memory_space<vmem>>, %arg5: memref<8x!tpu.dma_semaphore, #tpu.memory_space<semaphore_mem>>) attributes {dimension_semantics = [#tpu.dimension_semantics<arbitrary>], iteration_bounds = array<i64: 1>, scalar_prefetch = 1 : i64, scratch_operands = 2 : i64, tpu.core_type = #tpu.core_type<tc>, window_params = [{}, {pipeline_mode = #tpu.pipeline_mode<synchronous>, transform_indices = @transform_1, window_bounds = array<i64: 8, 32>}]} {
    %c0 = arith.constant 0 : index
    %0 = memref.load %arg1[%c0] : memref<8xi32, #tpu.memory_space<smem>>
    %c0_i32 = arith.constant 0 : i32
    %c0_i32_0 = arith.constant 0 : i32
    %1 = tpu.memref_slice %arg2[%0, %c0_i32_0] : memref<4000x32xf32, #tpu.memory_space<any>> -> memref<1x32xf32, #tpu.memory_space<any>>
    %c0_i32_1 = arith.constant 0 : i32
    %c0_i32_2 = arith.constant 0 : i32
    %2 = tpu.memref_slice %arg4[%c0_i32_1, %c0_i32_2] : memref<8x32xf32, #tpu.memory_space<vmem>> -> memref<1x32xf32, #tpu.memory_space<vmem>>
    %3 = tpu.memref_slice %arg5[%c0_i32] : memref<8x!tpu.dma_semaphore, #tpu.memory_space<semaphore_mem>> -> memref<1x!tpu.dma_semaphore, #tpu.memory_space<semaphore_mem>>
    %4 = tpu.memref_squeeze %3 : memref<1x!tpu.dma_semaphore, #tpu.memory_space<semaphore_mem>> -> memref<!tpu.dma_semaphore, #tpu.memory_space<semaphore_mem>>
    tpu.enqueue_dma source(%1 : memref<1x32xf32, #tpu.memory_space<any>>) target(%2 : memref<1x32xf32, #tpu.memory_space<vmem>>) target_semaphore(%4 : memref<!tpu.dma_semaphore, #tpu.memory_space<semaphore_mem>>)
    %c1 = arith.constant 1 : index
    %5 = memref.load %arg1[%c1] : memref<8xi32, #tpu.memory_space<smem>>
    %c1_i32 = arith.constant 1 : i32
    %c0_i32_3 = arith.constant 0 : i32
    %6 = tpu.memref_slice %arg2[%5, %c0_i32_3] : memref<4000x32xf32, #tpu.memory_space<any>> -> memref<1x32xf32, #tpu.memory_space<any>>
    %c1_i32_4 = arith.constant 1 : i32
    %c0_i32_5 = arith.constant 0 : i32
    %7 = tpu.memref_slice %arg4[%c1_i32_4, %c0_i32_5] : memref<8x32xf32, #tpu.memory_space<vmem>> -> memref<1x32xf32, #tpu.memory_space<vmem>>
    %8 = tpu.memref_slice %arg5[%c1_i32] : memref<8x!tpu.dma_semaphore, #tpu.memory_space<semaphore_mem>> -> memref<1x!tpu.dma_semaphore, #tpu.memory_space<semaphore_mem>>
    %9 = tpu.memref_squeeze %8 : memref<1x!tpu.dma_semaphore, #tpu.memory_space<semaphore_mem>> -> memref<!tpu.dma_semaphore, #tpu.memory_space<semaphore_mem>>
    tpu.enqueue_dma source(%6 : memref<1x32xf32, #tpu.memory_space<any>>) target(%7 : memref<1x32xf32, #tpu.memory_space<vmem>>) target_semaphore(%9 : memref<!tpu.dma_semaphore, #tpu.memory_space<semaphore_mem>>)
    %c2 = arith.constant 2 : index
    %10 = memref.load %arg1[%c2] : memref<8xi32, #tpu.memory_space<smem>>
    %c2_i32 = arith.constant 2 : i32
    %c0_i32_6 = arith.constant 0 : i32
    %11 = tpu.memref_slice %arg2[%10, %c0_i32_6] : memref<4000x32xf32, #tpu.memory_space<any>> -> memref<1x32xf32, #tpu.memory_space<any>>
    %c2_i32_7 = arith.constant 2 : i32
    %c0_i32_8 = arith.constant 0 : i32
    %12 = tpu.memref_slice %arg4[%c2_i32_7, %c0_i32_8] : memref<8x32xf32, #tpu.memory_space<vmem>> -> memref<1x32xf32, #tpu.memory_space<vmem>>
    %13 = tpu.memref_slice %arg5[%c2_i32] : memref<8x!tpu.dma_semaphore, #tpu.memory_space<semaphore_mem>> -> memref<1x!tpu.dma_semaphore, #tpu.memory_space<semaphore_mem>>
    %14 = tpu.memref_squeeze %13 : memref<1x!tpu.dma_semaphore, #tpu.memory_space<semaphore_mem>> -> memref<!tpu.dma_semaphore, #tpu.memory_space<semaphore_mem>>
    tpu.enqueue_dma source(%11 : memref<1x32xf32, #tpu.memory_space<any>>) target(%12 : memref<1x32xf32, #tpu.memory_space<vmem>>) target_semaphore(%14 : memref<!tpu.dma_semaphore, #tpu.memory_space<semaphore_mem>>)
    %c3 = arith.constant 3 : index
    %15 = memref.load %arg1[%c3] : memref<8xi32, #tpu.memory_space<smem>>
    %c3_i32 = arith.constant 3 : i32
    %c0_i32_9 = arith.constant 0 : i32
    %16 = tpu.memref_slice %arg2[%15, %c0_i32_9] : memref<4000x32xf32, #tpu.memory_space<any>> -> memref<1x32xf32, #tpu.memory_space<any>>
    %c3_i32_10 = arith.constant 3 : i32
    %c0_i32_11 = arith.constant 0 : i32
    %17 = tpu.memref_slice %arg4[%c3_i32_10, %c0_i32_11] : memref<8x32xf32, #tpu.memory_space<vmem>> -> memref<1x32xf32, #tpu.memory_space<vmem>>
    %18 = tpu.memref_slice %arg5[%c3_i32] : memref<8x!tpu.dma_semaphore, #tpu.memory_space<semaphore_mem>> -> memref<1x!tpu.dma_semaphore, #tpu.memory_space<semaphore_mem>>
    %19 = tpu.memref_squeeze %18 : memref<1x!tpu.dma_semaphore, #tpu.memory_space<semaphore_mem>> -> memref<!tpu.dma_semaphore, #tpu.memory_space<semaphore_mem>>
    tpu.enqueue_dma source(%16 : memref<1x32xf32, #tpu.memory_space<any>>) target(%17 : memref<1x32xf32, #tpu.memory_space<vmem>>) target_semaphore(%19 : memref<!tpu.dma_semaphore, #tpu.memory_space<semaphore_mem>>)
    %c4 = arith.constant 4 : index
    %20 = memref.load %arg1[%c4] : memref<8xi32, #tpu.memory_space<smem>>
    %c4_i32 = arith.constant 4 : i32
    %c0_i32_12 = arith.constant 0 : i32
    %21 = tpu.memref_slice %arg2[%20, %c0_i32_12] : memref<4000x32xf32, #tpu.memory_space<any>> -> memref<1x32xf32, #tpu.memory_space<any>>
    %c4_i32_13 = arith.constant 4 : i32
    %c0_i32_14 = arith.constant 0 : i32
    %22 = tpu.memref_slice %arg4[%c4_i32_13, %c0_i32_14] : memref<8x32xf32, #tpu.memory_space<vmem>> -> memref<1x32xf32, #tpu.memory_space<vmem>>
    %23 = tpu.memref_slice %arg5[%c4_i32] : memref<8x!tpu.dma_semaphore, #tpu.memory_space<semaphore_mem>> -> memref<1x!tpu.dma_semaphore, #tpu.memory_space<semaphore_mem>>
    %24 = tpu.memref_squeeze %23 : memref<1x!tpu.dma_semaphore, #tpu.memory_space<semaphore_mem>> -> memref<!tpu.dma_semaphore, #tpu.memory_space<semaphore_mem>>
    tpu.enqueue_dma source(%21 : memref<1x32xf32, #tpu.memory_space<any>>) target(%22 : memref<1x32xf32, #tpu.memory_space<vmem>>) target_semaphore(%24 : memref<!tpu.dma_semaphore, #tpu.memory_space<semaphore_mem>>)
    %c5 = arith.constant 5 : index
    %25 = memref.load %arg1[%c5] : memref<8xi32, #tpu.memory_space<smem>>
    %c5_i32 = arith.constant 5 : i32
    %c0_i32_15 = arith.constant 0 : i32
    %26 = tpu.memref_slice %arg2[%25, %c0_i32_15] : memref<4000x32xf32, #tpu.memory_space<any>> -> memref<1x32xf32, #tpu.memory_space<any>>
    %c5_i32_16 = arith.constant 5 : i32
    %c0_i32_17 = arith.constant 0 : i32
    %27 = tpu.memref_slice %arg4[%c5_i32_16, %c0_i32_17] : memref<8x32xf32, #tpu.memory_space<vmem>> -> memref<1x32xf32, #tpu.memory_space<vmem>>
    %28 = tpu.memref_slice %arg5[%c5_i32] : memref<8x!tpu.dma_semaphore, #tpu.memory_space<semaphore_mem>> -> memref<1x!tpu.dma_semaphore, #tpu.memory_space<semaphore_mem>>
    %29 = tpu.memref_squeeze %28 : memref<1x!tpu.dma_semaphore, #tpu.memory_space<semaphore_mem>> -> memref<!tpu.dma_semaphore, #tpu.memory_space<semaphore_mem>>
    tpu.enqueue_dma source(%26 : memref<1x32xf32, #tpu.memory_space<any>>) target(%27 : memref<1x32xf32, #tpu.memory_space<vmem>>) target_semaphore(%29 : memref<!tpu.dma_semaphore, #tpu.memory_space<semaphore_mem>>)
    %c6 = arith.constant 6 : index
    %30 = memref.load %arg1[%c6] : memref<8xi32, #tpu.memory_space<smem>>
    %c6_i32 = arith.constant 6 : i32
    %c0_i32_18 = arith.constant 0 : i32
    %31 = tpu.memref_slice %arg2[%30, %c0_i32_18] : memref<4000x32xf32, #tpu.memory_space<any>> -> memref<1x32xf32, #tpu.memory_space<any>>
    %c6_i32_19 = arith.constant 6 : i32
    %c0_i32_20 = arith.constant 0 : i32
    %32 = tpu.memref_slice %arg4[%c6_i32_19, %c0_i32_20] : memref<8x32xf32, #tpu.memory_space<vmem>> -> memref<1x32xf32, #tpu.memory_space<vmem>>
    %33 = tpu.memref_slice %arg5[%c6_i32] : memref<8x!tpu.dma_semaphore, #tpu.memory_space<semaphore_mem>> -> memref<1x!tpu.dma_semaphore, #tpu.memory_space<semaphore_mem>>
    %34 = tpu.memref_squeeze %33 : memref<1x!tpu.dma_semaphore, #tpu.memory_space<semaphore_mem>> -> memref<!tpu.dma_semaphore, #tpu.memory_space<semaphore_mem>>
    tpu.enqueue_dma source(%31 : memref<1x32xf32, #tpu.memory_space<any>>) target(%32 : memref<1x32xf32, #tpu.memory_space<vmem>>) target_semaphore(%34 : memref<!tpu.dma_semaphore, #tpu.memory_space<semaphore_mem>>)
    %c7 = arith.constant 7 : index
    %35 = memref.load %arg1[%c7] : memref<8xi32, #tpu.memory_space<smem>>
    %c7_i32 = arith.constant 7 : i32
    %c0_i32_21 = arith.constant 0 : i32
    %36 = tpu.memref_slice %arg2[%35, %c0_i32_21] : memref<4000x32xf32, #tpu.memory_space<any>> -> memref<1x32xf32, #tpu.memory_space<any>>
    %c7_i32_22 = arith.constant 7 : i32
    %c0_i32_23 = arith.constant 0 : i32
    %37 = tpu.memref_slice %arg4[%c7_i32_22, %c0_i32_23] : memref<8x32xf32, #tpu.memory_space<vmem>> -> memref<1x32xf32, #tpu.memory_space<vmem>>
    %38 = tpu.memref_slice %arg5[%c7_i32] : memref<8x!tpu.dma_semaphore, #tpu.memory_space<semaphore_mem>> -> memref<1x!tpu.dma_semaphore, #tpu.memory_space<semaphore_mem>>
    %39 = tpu.memref_squeeze %38 : memref<1x!tpu.dma_semaphore, #tpu.memory_space<semaphore_mem>> -> memref<!tpu.dma_semaphore, #tpu.memory_space<semaphore_mem>>
    tpu.enqueue_dma source(%36 : memref<1x32xf32, #tpu.memory_space<any>>) target(%37 : memref<1x32xf32, #tpu.memory_space<vmem>>) target_semaphore(%39 : memref<!tpu.dma_semaphore, #tpu.memory_space<semaphore_mem>>)
    %c0_i32_24 = arith.constant 0 : i32
    %c0_i32_25 = arith.constant 0 : i32
    %40 = tpu.memref_slice %arg2[%0, %c0_i32_25] : memref<4000x32xf32, #tpu.memory_space<any>> -> memref<1x32xf32, #tpu.memory_space<any>>
    %c0_i32_26 = arith.constant 0 : i32
    %c0_i32_27 = arith.constant 0 : i32
    %41 = tpu.memref_slice %arg4[%c0_i32_26, %c0_i32_27] : memref<8x32xf32, #tpu.memory_space<vmem>> -> memref<1x32xf32, #tpu.memory_space<vmem>>
    %42 = tpu.memref_slice %arg5[%c0_i32_24] : memref<8x!tpu.dma_semaphore, #tpu.memory_space<semaphore_mem>> -> memref<1x!tpu.dma_semaphore, #tpu.memory_space<semaphore_mem>>
    %43 = tpu.memref_squeeze %42 : memref<1x!tpu.dma_semaphore, #tpu.memory_space<semaphore_mem>> -> memref<!tpu.dma_semaphore, #tpu.memory_space<semaphore_mem>>
    tpu.wait_dma2 semaphore(%43 : memref<!tpu.dma_semaphore, #tpu.memory_space<semaphore_mem>>) src(%40 : memref<1x32xf32, #tpu.memory_space<any>>) dst(%41 : memref<1x32xf32, #tpu.memory_space<vmem>>)
    %c1_i32_28 = arith.constant 1 : i32
    %c0_i32_29 = arith.constant 0 : i32
    %44 = tpu.memref_slice %arg2[%5, %c0_i32_29] : memref<4000x32xf32, #tpu.memory_space<any>> -> memref<1x32xf32, #tpu.memory_space<any>>
    %c1_i32_30 = arith.constant 1 : i32
    %c0_i32_31 = arith.constant 0 : i32
    %45 = tpu.memref_slice %arg4[%c1_i32_30, %c0_i32_31] : memref<8x32xf32, #tpu.memory_space<vmem>> -> memref<1x32xf32, #tpu.memory_space<vmem>>
    %46 = tpu.memref_slice %arg5[%c1_i32_28] : memref<8x!tpu.dma_semaphore, #tpu.memory_space<semaphore_mem>> -> memref<1x!tpu.dma_semaphore, #tpu.memory_space<semaphore_mem>>
    %47 = tpu.memref_squeeze %46 : memref<1x!tpu.dma_semaphore, #tpu.memory_space<semaphore_mem>> -> memref<!tpu.dma_semaphore, #tpu.memory_space<semaphore_mem>>
    tpu.wait_dma2 semaphore(%47 : memref<!tpu.dma_semaphore, #tpu.memory_space<semaphore_mem>>) src(%44 : memref<1x32xf32, #tpu.memory_space<any>>) dst(%45 : memref<1x32xf32, #tpu.memory_space<vmem>>)
    %c2_i32_32 = arith.constant 2 : i32
    %c0_i32_33 = arith.constant 0 : i32
    %48 = tpu.memref_slice %arg2[%10, %c0_i32_33] : memref<4000x32xf32, #tpu.memory_space<any>> -> memref<1x32xf32, #tpu.memory_space<any>>
    %c2_i32_34 = arith.constant 2 : i32
    %c0_i32_35 = arith.constant 0 : i32
    %49 = tpu.memref_slice %arg4[%c2_i32_34, %c0_i32_35] : memref<8x32xf32, #tpu.memory_space<vmem>> -> memref<1x32xf32, #tpu.memory_space<vmem>>
    %50 = tpu.memref_slice %arg5[%c2_i32_32] : memref<8x!tpu.dma_semaphore, #tpu.memory_space<semaphore_mem>> -> memref<1x!tpu.dma_semaphore, #tpu.memory_space<semaphore_mem>>
    %51 = tpu.memref_squeeze %50 : memref<1x!tpu.dma_semaphore, #tpu.memory_space<semaphore_mem>> -> memref<!tpu.dma_semaphore, #tpu.memory_space<semaphore_mem>>
    tpu.wait_dma2 semaphore(%51 : memref<!tpu.dma_semaphore, #tpu.memory_space<semaphore_mem>>) src(%48 : memref<1x32xf32, #tpu.memory_space<any>>) dst(%49 : memref<1x32xf32, #tpu.memory_space<vmem>>)
    %c3_i32_36 = arith.constant 3 : i32
    %c0_i32_37 = arith.constant 0 : i32
    %52 = tpu.memref_slice %arg2[%15, %c0_i32_37] : memref<4000x32xf32, #tpu.memory_space<any>> -> memref<1x32xf32, #tpu.memory_space<any>>
    %c3_i32_38 = arith.constant 3 : i32
    %c0_i32_39 = arith.constant 0 : i32
    %53 = tpu.memref_slice %arg4[%c3_i32_38, %c0_i32_39] : memref<8x32xf32, #tpu.memory_space<vmem>> -> memref<1x32xf32, #tpu.memory_space<vmem>>
    %54 = tpu.memref_slice %arg5[%c3_i32_36] : memref<8x!tpu.dma_semaphore, #tpu.memory_space<semaphore_mem>> -> memref<1x!tpu.dma_semaphore, #tpu.memory_space<semaphore_mem>>
    %55 = tpu.memref_squeeze %54 : memref<1x!tpu.dma_semaphore, #tpu.memory_space<semaphore_mem>> -> memref<!tpu.dma_semaphore, #tpu.memory_space<semaphore_mem>>
    tpu.wait_dma2 semaphore(%55 : memref<!tpu.dma_semaphore, #tpu.memory_space<semaphore_mem>>) src(%52 : memref<1x32xf32, #tpu.memory_space<any>>) dst(%53 : memref<1x32xf32, #tpu.memory_space<vmem>>)
    %c4_i32_40 = arith.constant 4 : i32
    %c0_i32_41 = arith.constant 0 : i32
    %56 = tpu.memref_slice %arg2[%20, %c0_i32_41] : memref<4000x32xf32, #tpu.memory_space<any>> -> memref<1x32xf32, #tpu.memory_space<any>>
    %c4_i32_42 = arith.constant 4 : i32
    %c0_i32_43 = arith.constant 0 : i32
    %57 = tpu.memref_slice %arg4[%c4_i32_42, %c0_i32_43] : memref<8x32xf32, #tpu.memory_space<vmem>> -> memref<1x32xf32, #tpu.memory_space<vmem>>
    %58 = tpu.memref_slice %arg5[%c4_i32_40] : memref<8x!tpu.dma_semaphore, #tpu.memory_space<semaphore_mem>> -> memref<1x!tpu.dma_semaphore, #tpu.memory_space<semaphore_mem>>
    %59 = tpu.memref_squeeze %58 : memref<1x!tpu.dma_semaphore, #tpu.memory_space<semaphore_mem>> -> memref<!tpu.dma_semaphore, #tpu.memory_space<semaphore_mem>>
    tpu.wait_dma2 semaphore(%59 : memref<!tpu.dma_semaphore, #tpu.memory_space<semaphore_mem>>) src(%56 : memref<1x32xf32, #tpu.memory_space<any>>) dst(%57 : memref<1x32xf32, #tpu.memory_space<vmem>>)
    %c5_i32_44 = arith.constant 5 : i32
    %c0_i32_45 = arith.constant 0 : i32
    %60 = tpu.memref_slice %arg2[%25, %c0_i32_45] : memref<4000x32xf32, #tpu.memory_space<any>> -> memref<1x32xf32, #tpu.memory_space<any>>
    %c5_i32_46 = arith.constant 5 : i32
    %c0_i32_47 = arith.constant 0 : i32
    %61 = tpu.memref_slice %arg4[%c5_i32_46, %c0_i32_47] : memref<8x32xf32, #tpu.memory_space<vmem>> -> memref<1x32xf32, #tpu.memory_space<vmem>>
    %62 = tpu.memref_slice %arg5[%c5_i32_44] : memref<8x!tpu.dma_semaphore, #tpu.memory_space<semaphore_mem>> -> memref<1x!tpu.dma_semaphore, #tpu.memory_space<semaphore_mem>>
    %63 = tpu.memref_squeeze %62 : memref<1x!tpu.dma_semaphore, #tpu.memory_space<semaphore_mem>> -> memref<!tpu.dma_semaphore, #tpu.memory_space<semaphore_mem>>
    tpu.wait_dma2 semaphore(%63 : memref<!tpu.dma_semaphore, #tpu.memory_space<semaphore_mem>>) src(%60 : memref<1x32xf32, #tpu.memory_space<any>>) dst(%61 : memref<1x32xf32, #tpu.memory_space<vmem>>)
    %c6_i32_48 = arith.constant 6 : i32
    %c0_i32_49 = arith.constant 0 : i32
    %64 = tpu.memref_slice %arg2[%30, %c0_i32_49] : memref<4000x32xf32, #tpu.memory_space<any>> -> memref<1x32xf32, #tpu.memory_space<any>>
    %c6_i32_50 = arith.constant 6 : i32
    %c0_i32_51 = arith.constant 0 : i32
    %65 = tpu.memref_slice %arg4[%c6_i32_50, %c0_i32_51] : memref<8x32xf32, #tpu.memory_space<vmem>> -> memref<1x32xf32, #tpu.memory_space<vmem>>
    %66 = tpu.memref_slice %arg5[%c6_i32_48] : memref<8x!tpu.dma_semaphore, #tpu.memory_space<semaphore_mem>> -> memref<1x!tpu.dma_semaphore, #tpu.memory_space<semaphore_mem>>
    %67 = tpu.memref_squeeze %66 : memref<1x!tpu.dma_semaphore, #tpu.memory_space<semaphore_mem>> -> memref<!tpu.dma_semaphore, #tpu.memory_space<semaphore_mem>>
    tpu.wait_dma2 semaphore(%67 : memref<!tpu.dma_semaphore, #tpu.memory_space<semaphore_mem>>) src(%64 : memref<1x32xf32, #tpu.memory_space<any>>) dst(%65 : memref<1x32xf32, #tpu.memory_space<vmem>>)
    %c7_i32_52 = arith.constant 7 : i32
    %c0_i32_53 = arith.constant 0 : i32
    %68 = tpu.memref_slice %arg2[%35, %c0_i32_53] : memref<4000x32xf32, #tpu.memory_space<any>> -> memref<1x32xf32, #tpu.memory_space<any>>
    %c7_i32_54 = arith.constant 7 : i32
    %c0_i32_55 = arith.constant 0 : i32
    %69 = tpu.memref_slice %arg4[%c7_i32_54, %c0_i32_55] : memref<8x32xf32, #tpu.memory_space<vmem>> -> memref<1x32xf32, #tpu.memory_space<vmem>>
    %70 = tpu.memref_slice %arg5[%c7_i32_52] : memref<8x!tpu.dma_semaphore, #tpu.memory_space<semaphore_mem>> -> memref<1x!tpu.dma_semaphore, #tpu.memory_space<semaphore_mem>>
    %71 = tpu.memref_squeeze %70 : memref<1x!tpu.dma_semaphore, #tpu.memory_space<semaphore_mem>> -> memref<!tpu.dma_semaphore, #tpu.memory_space<semaphore_mem>>
    tpu.wait_dma2 semaphore(%71 : memref<!tpu.dma_semaphore, #tpu.memory_space<semaphore_mem>>) src(%68 : memref<1x32xf32, #tpu.memory_space<any>>) dst(%69 : memref<1x32xf32, #tpu.memory_space<vmem>>)
    %c0_56 = arith.constant 0 : index
    %c0_57 = arith.constant 0 : index
    %72 = vector.load %arg4[%c0_56, %c0_57] : memref<8x32xf32, #tpu.memory_space<vmem>>, vector<8x32xf32>
    %c0_58 = arith.constant 0 : index
    %c0_59 = arith.constant 0 : index
    %73 = vector.load %arg3[%c0_58, %c0_59] : memref<8x32xf32, #tpu.memory_space<vmem>>, vector<8x32xf32>
    tpu.vector_store %arg3[%c0_58, %c0_59], %72 {strides = array<i32>} : memref<8x32xf32, #tpu.memory_space<vmem>>, vector<8x32xf32>,
    return
  }
  func.func @transform_1(%arg0: i32, %arg1: memref<8xi32, #tpu.memory_space<smem>>) -> (i32, i32) {
    %c0_i32 = arith.constant 0 : i32
    %c0_i32_0 = arith.constant 0 : i32
    %c0_i32_1 = arith.constant 0 : i32
    return %c0_i32, %c0_i32_0 : i32, i32
  }
}

</mosaic_0001>

<llo_original>
// kernel: tpu_custom_call.1
$region0: #{tpu_custom_call.1}
  #allocation0 [shape = 'u32[]', space=smem, size = 0x4, offset = 0x4, fixed_abs, tag = 'smem constant byte address 0x4 - core index']
  #allocation1 [shape = 'u32[144,128]{1,0:T(1,128)}', space=vmem, size = 0x12000, scoped, tag = 'internal scratch']
  #allocation2 [shape = 'f32[8,32]{1,0:T(8,128)}', space=vmem, size = 0x1000, scoped, tag = 'scratch operand']
  #allocation3 [shape = 's32[8]{0}', space=sflag, size = 0x20, scoped, tag = 'scratch operand']
  #allocation4 [shape = 's32[1]{0}', space=sflag, size = 0x4, scoped, tag = 'scoped memory for tpu_custom_call.1']
  #allocation5 [shape = 'u8[512]{0}', space=smem, size = 0x200, scoped, tag = 'prefetched SMEM operand 0']
  #allocation8 [shape = 's32[]', space=sflag, size = 0x4, offset = 0, fixed_abs, tag = 'sflag constant byte address 0x0 - dummy sync flag']
  #allocation9 [shape = 's32[]', space=sflag, size = 0x4, offset = 0, fixed_abs, tag = 'sflag constant byte address 0x0 - dummy sync flag']
  #allocation10 [shape = 's32[]', space=sflag, size = 0x4, offset = 0, fixed_abs, tag = 'sflag constant byte address 0x0 - dummy sync flag']
  #allocation11 [shape = 's32[]', space=sflag, size = 0x4, offset = 0, fixed_abs, tag = 'sflag constant byte address 0x0 - dummy sync flag']
  #allocation12 [shape = 's32[]', space=sflag, size = 0x4, offset = 0, fixed_abs, tag = 'sflag constant byte address 0x0 - dummy sync flag']
  #allocation13 [shape = 's32[]', space=sflag, size = 0x4, offset = 0, fixed_abs, tag = 'sflag constant byte address 0x0 - dummy sync flag']
  #allocation14 [shape = 's32[]', space=sflag, size = 0x4, offset = 0, fixed_abs, tag = 'sflag constant byte address 0x0 - dummy sync flag']
  #allocation15 [shape = 's32[]', space=sflag, size = 0x4, offset = 0, fixed_abs, tag = 'sflag constant byte address 0x0 - dummy sync flag']
  %s0 = inlined_call_operand.vmem [shape: s32[8], index: 0, kind: input, shape index: {}]
  %s1 = inlined_call_operand.vmem [shape: f32[4000,32], index: 1, kind: input, shape index: {}]
  %s2 = inlined_call_operand.hbm [shape: f32[8,32], index: 2, kind: output, shape index: {}]
  %s3 = sld [smem:[#allocation0]]
  $region250: #{tpu_custom_call.1} parent=0
    _
  %s5 = ssub.s32 1, %s3
  %s6 = scalar_select 0, %s5, %s3
  %s7 = sshll.u32 %s0, 4
  %s8 = int_to_ptr.vmem [resolvable:$true] %s7
  %10 = dma.vmem_to_smem %s8, 16, [#allocation5], [#allocation4]
  %11 = dma.done [#allocation4], 16
  %12 = sfence
  $region1: #{tpu_custom_call.1} parent=0
    #allocation6 [shape = 'u8[4096]{0}', space=vmem, size = 0x1000, scoped, tag = 'output window, operand 0, single buffered']
    #allocation7 [shape = 's32[1]{0}', space=sflag, size = 0x4, scoped, tag = 'scoped memory for tpu_custom_call.1']
    %13 = vsyncpa [#allocation7], 0
    %s14 = sld [smem:[#allocation5]]
    %s15 = scalar_lea.vmem %s1, %s14
    %p17 = scmp.lt.u32.totalorder 1, 8
    %p18 = pneg %p17
    // Predicated region
    $region2: #{tpu_custom_call.1} parent=1 // pred_check
      _
    $region3: #{tpu_custom_call.1} parent=1 // pred_check_branch
      %20 = sbr.rel (%p17) target = $region5
    $region4: #{tpu_custom_call.1} parent=1 // pred_region
      %s35 = sand.u32 1, 7
      %p36 = scmp.eq.s32.totalorder %s35, 0
      %p37 = pneg %p36
      // Predicated region
      $region17: #{tpu_custom_call.1} parent=4 // pred_check
        _
      $region18: #{tpu_custom_call.1} parent=4 // pred_check_branch
        %39 = sbr.rel (%p36) target = $region20
      $region19: #{tpu_custom_call.1} parent=4 // pred_region
        %s40 = sand.u32 1, 7
        %s41 = ssub.s32 1, %s40
        %s42 = scalar_lea.vmem %s15, %s41
        %s43 = ssub.s32 1, %s40
        %s44 = scalar_lea.vmem [#allocation2], %s43
        %s45 = sshllo.u32 0, %s40
        loop: start=0, step=1, limit=1
        $region21: #{tpu_custom_call.1} parent=19 // loop_pre_header
          _
        $region22: #{tpu_custom_call.1} parent=19 // loop_header
          %s47 = sphi 0, %s51
          %p48 = scmp.ge.s32.totalorder %s47, 1
          %s52 = sphi %s42, %s42
          %s53 = sphi %s44, %s44
        $region23: #{tpu_custom_call.1} parent=19 // loop_header_branch
          %50 = sbr.rel (%p48) target = $region27
        $region24: #{tpu_custom_call.1} parent=19 // loop_body
          %v54 = vld [vmem:[%s52] sm:%s45]
          %55 = vst [vmem:[%s53] sm:%s45] %v54
        $region25: #{tpu_custom_call.1} parent=19 // loop_footer
          %s51 = sadd.s32 1, %s47
        $region26: #{tpu_custom_call.1} parent=19 // loop_footer_branch
          %46 = sbr.rel target = $region22
        $region27: #{tpu_custom_call.1} parent=19 // loop_exit
          _
      $region20: #{tpu_custom_call.1} parent=4 // pred_fallthru
        _
    $region5: #{tpu_custom_call.1} parent=1 // pred_fallthru
      _
    // Predicated region
    $region6: #{tpu_custom_call.1} parent=1 // pred_check
      %p21 = pneg %p17
    $region7: #{tpu_custom_call.1} parent=1 // pred_check_branch
      %23 = sbr.rel (%p21) target = $region9
    $region8: #{tpu_custom_call.1} parent=1 // pred_region
      %s24 = sshllo.u32 0, 1
      loop: start=0, step=1, limit=1
      $region10: #{tpu_custom_call.1} parent=8 // loop_pre_header
        _
      $region11: #{tpu_custom_call.1} parent=8 // loop_header
        %s26 = sphi 0, %s30
        %p27 = scmp.ge.s32.totalorder %s26, 1
        %s31 = sphi %s15, %s15
        %s32 = sphi [#allocation2], [#allocation2]
      $region12: #{tpu_custom_call.1} parent=8 // loop_header_branch
        %29 = sbr.rel (%p27) target = $region16
      $region13: #{tpu_custom_call.1} parent=8 // loop_body
        %v33 = vld [vmem:[%s31] sm:%s24]
        %34 = vst [vmem:[%s32] sm:%s24] %v33
      $region14: #{tpu_custom_call.1} parent=8 // loop_footer
        %s30 = sadd.s32 1, %s26
      $region15: #{tpu_custom_call.1} parent=8 // loop_footer_branch
        %25 = sbr.rel target = $region11
      $region16: #{tpu_custom_call.1} parent=8 // loop_exit
        _
    $region9: #{tpu_custom_call.1} parent=1 // pred_fallthru
      _
    // Predicated region
    $region28: #{tpu_custom_call.1} parent=1 // pred_check
      _
    $region29: #{tpu_custom_call.1} parent=1 // pred_check_branch
      %58 = sbr.rel (0) target = $region31
    $region30: #{tpu_custom_call.1} parent=1 // pred_region
      %59 = vsyncadd [#allocation3], 16
    $region31: #{tpu_custom_call.1} parent=1 // pred_fallthru
      _
    %s60 = sld [smem:[#allocation5 + $0x1]]
    %s61 = scalar_lea.vmem %s1, %s60
    %s62 = scalar_lea.vmem [#allocation2], 1
    %s63 = scalar_lea.sflag [#allocation3], 1
    %p65 = scmp.lt.u32.totalorder 1, 8
    %p66 = pneg %p65
    // Predicated region
    $region32: #{tpu_custom_call.1} parent=1 // pred_check
      _
    $region33: #{tpu_custom_call.1} parent=1 // pred_check_branch
      %68 = sbr.rel (%p65) target = $region35
    $region34: #{tpu_custom_call.1} parent=1 // pred_region
      %s83 = sand.u32 1, 7
      %p84 = scmp.eq.s32.totalorder %s83, 0
      %p85 = pneg %p84
      // Predicated region
      $region47: #{tpu_custom_call.1} parent=34 // pred_check
        _
      $region48: #{tpu_custom_call.1} parent=34 // pred_check_branch
        %87 = sbr.rel (%p84) target = $region50
      $region49: #{tpu_custom_call.1} parent=34 // pred_region
        %s88 = sand.u32 1, 7
        %s89 = ssub.s32 1, %s88
        %s90 = scalar_lea.vmem %s61, %s89
        %s91 = ssub.s32 1, %s88
        %s92 = scalar_lea.vmem %s62, %s91 [#allocation2]
        %s93 = sshllo.u32 0, %s88
        loop: start=0, step=1, limit=1
        $region51: #{tpu_custom_call.1} parent=49 // loop_pre_header
          _
        $region52: #{tpu_custom_call.1} parent=49 // loop_header
          %s95 = sphi 0, %s99
          %p96 = scmp.ge.s32.totalorder %s95, 1
          %s100 = sphi %s90, %s90
          %s101 = sphi %s92, %s92
        $region53: #{tpu_custom_call.1} parent=49 // loop_header_branch
          %98 = sbr.rel (%p96) target = $region57
        $region54: #{tpu_custom_call.1} parent=49 // loop_body
          %v102 = vld [vmem:[%s100] sm:%s93]
          %103 = vst [vmem:[%s101] sm:%s93] %v102
        $region55: #{tpu_custom_call.1} parent=49 // loop_footer
          %s99 = sadd.s32 1, %s95
        $region56: #{tpu_custom_call.1} parent=49 // loop_footer_branch
          %94 = sbr.rel target = $region52
        $region57: #{tpu_custom_call.1} parent=49 // loop_exit
          _
      $region50: #{tpu_custom_call.1} parent=34 // pred_fallthru
        _
    $region35: #{tpu_custom_call.1} parent=1 // pred_fallthru
      _
    // Predicated region
    $region36: #{tpu_custom_call.1} parent=1 // pred_check
      %p69 = pneg %p65
    $region37: #{tpu_custom_call.1} parent=1 // pred_check_branch
      %71 = sbr.rel (%p69) target = $region39
    $region38: #{tpu_custom_call.1} parent=1 // pred_region
      %s72 = sshllo.u32 0, 1
      loop: start=0, step=1, limit=1
      $region40: #{tpu_custom_call.1} parent=38 // loop_pre_header
        _
      $region41: #{tpu_custom_call.1} parent=38 // loop_header
        %s74 = sphi 0, %s78
        %p75 = scmp.ge.s32.totalorder %s74, 1
        %s79 = sphi %s61, %s61
        %s80 = sphi %s62, %s62
      $region42: #{tpu_custom_call.1} parent=38 // loop_header_branch
        %77 = sbr.rel (%p75) target = $region46
      $region43: #{tpu_custom_call.1} parent=38 // loop_body
        %v81 = vld [vmem:[%s79] sm:%s72]
        %82 = vst [vmem:[%s80] sm:%s72] %v81
      $region44: #{tpu_custom_call.1} parent=38 // loop_footer
        %s78 = sadd.s32 1, %s74
      $region45: #{tpu_custom_call.1} parent=38 // loop_footer_branch
        %73 = sbr.rel target = $region41
      $region46: #{tpu_custom_call.1} parent=38 // loop_exit
        _
    $region39: #{tpu_custom_call.1} parent=1 // pred_fallthru
      _
    // Predicated region
    $region58: #{tpu_custom_call.1} parent=1 // pred_check
      _
    $region59: #{tpu_custom_call.1} parent=1 // pred_check_branch
      %106 = sbr.rel (0) target = $region61
    $region60: #{tpu_custom_call.1} parent=1 // pred_region
      %107 = vsyncadd %s63, 16
    $region61: #{tpu_custom_call.1} parent=1 // pred_fallthru
      _
    %s108 = sld [smem:[#allocation5 + $0x2]]
    %s109 = scalar_lea.vmem %s1, %s108
    %s110 = scalar_lea.vmem [#allocation2], 2
    %s111 = scalar_lea.sflag [#allocation3], 2
    %p113 = scmp.lt.u32.totalorder 1, 8
    %p114 = pneg %p113
    // Predicated region
    $region62: #{tpu_custom_call.1} parent=1 // pred_check
      _
    $region63: #{tpu_custom_call.1} parent=1 // pred_check_branch
      %116 = sbr.rel (%p113) target = $region65
    $region64: #{tpu_custom_call.1} parent=1 // pred_region
      %s131 = sand.u32 1, 7
      %p132 = scmp.eq.s32.totalorder %s131, 0
      %p133 = pneg %p132
      // Predicated region
      $region77: #{tpu_custom_call.1} parent=64 // pred_check
        _
      $region78: #{tpu_custom_call.1} parent=64 // pred_check_branch
        %135 = sbr.rel (%p132) target = $region80
      $region79: #{tpu_custom_call.1} parent=64 // pred_region
        %s136 = sand.u32 1, 7
        %s137 = ssub.s32 1, %s136
        %s138 = scalar_lea.vmem %s109, %s137
        %s139 = ssub.s32 1, %s136
        %s140 = scalar_lea.vmem %s110, %s139 [#allocation2]
        %s141 = sshllo.u32 0, %s136
        loop: start=0, step=1, limit=1
        $region81: #{tpu_custom_call.1} parent=79 // loop_pre_header
          _
        $region82: #{tpu_custom_call.1} parent=79 // loop_header
          %s143 = sphi 0, %s147
          %p144 = scmp.ge.s32.totalorder %s143, 1
          %s148 = sphi %s138, %s138
          %s149 = sphi %s140, %s140
        $region83: #{tpu_custom_call.1} parent=79 // loop_header_branch
          %146 = sbr.rel (%p144) target = $region87
        $region84: #{tpu_custom_call.1} parent=79 // loop_body
          %v150 = vld [vmem:[%s148] sm:%s141]
          %151 = vst [vmem:[%s149] sm:%s141] %v150
        $region85: #{tpu_custom_call.1} parent=79 // loop_footer
          %s147 = sadd.s32 1, %s143
        $region86: #{tpu_custom_call.1} parent=79 // loop_footer_branch
          %142 = sbr.rel target = $region82
        $region87: #{tpu_custom_call.1} parent=79 // loop_exit
          _
      $region80: #{tpu_custom_call.1} parent=64 // pred_fallthru
        _
    $region65: #{tpu_custom_call.1} parent=1 // pred_fallthru
      _
    // Predicated region
    $region66: #{tpu_custom_call.1} parent=1 // pred_check
      %p117 = pneg %p113
    $region67: #{tpu_custom_call.1} parent=1 // pred_check_branch
      %119 = sbr.rel (%p117) target = $region69
    $region68: #{tpu_custom_call.1} parent=1 // pred_region
      %s120 = sshllo.u32 0, 1
      loop: start=0, step=1, limit=1
      $region70: #{tpu_custom_call.1} parent=68 // loop_pre_header
        _
      $region71: #{tpu_custom_call.1} parent=68 // loop_header
        %s122 = sphi 0, %s126
        %p123 = scmp.ge.s32.totalorder %s122, 1
        %s127 = sphi %s109, %s109
        %s128 = sphi %s110, %s110
      $region72: #{tpu_custom_call.1} parent=68 // loop_header_branch
        %125 = sbr.rel (%p123) target = $region76
      $region73: #{tpu_custom_call.1} parent=68 // loop_body
        %v129 = vld [vmem:[%s127] sm:%s120]
        %130 = vst [vmem:[%s128] sm:%s120] %v129
      $region74: #{tpu_custom_call.1} parent=68 // loop_footer
        %s126 = sadd.s32 1, %s122
      $region75: #{tpu_custom_call.1} parent=68 // loop_footer_branch
        %121 = sbr.rel target = $region71
      $region76: #{tpu_custom_call.1} parent=68 // loop_exit
        _
    $region69: #{tpu_custom_call.1} parent=1 // pred_fallthru
      _
    // Predicated region
    $region88: #{tpu_custom_call.1} parent=1 // pred_check
      _
    $region89: #{tpu_custom_call.1} parent=1 // pred_check_branch
      %154 = sbr.rel (0) target = $region91
    $region90: #{tpu_custom_call.1} parent=1 // pred_region
      %155 = vsyncadd %s111, 16
    $region91: #{tpu_custom_call.1} parent=1 // pred_fallthru
      _
    %s156 = sld [smem:[#allocation5 + $0x3]]
    %s157 = scalar_lea.vmem %s1, %s156
    %s158 = scalar_lea.vmem [#allocation2], 3
    %s159 = scalar_lea.sflag [#allocation3], 3
    %p161 = scmp.lt.u32.totalorder 1, 8
    %p162 = pneg %p161
    // Predicated region
    $region92: #{tpu_custom_call.1} parent=1 // pred_check
      _
    $region93: #{tpu_custom_call.1} parent=1 // pred_check_branch
      %164 = sbr.rel (%p161) target = $region95
    $region94: #{tpu_custom_call.1} parent=1 // pred_region
      %s179 = sand.u32 1, 7
      %p180 = scmp.eq.s32.totalorder %s179, 0
      %p181 = pneg %p180
      // Predicated region
      $region107: #{tpu_custom_call.1} parent=94 // pred_check
        _
      $region108: #{tpu_custom_call.1} parent=94 // pred_check_branch
        %183 = sbr.rel (%p180) target = $region110
      $region109: #{tpu_custom_call.1} parent=94 // pred_region
        %s184 = sand.u32 1, 7
        %s185 = ssub.s32 1, %s184
        %s186 = scalar_lea.vmem %s157, %s185
        %s187 = ssub.s32 1, %s184
        %s188 = scalar_lea.vmem %s158, %s187 [#allocation2]
        %s189 = sshllo.u32 0, %s184
        loop: start=0, step=1, limit=1
        $region111: #{tpu_custom_call.1} parent=109 // loop_pre_header
          _
        $region112: #{tpu_custom_call.1} parent=109 // loop_header
          %s191 = sphi 0, %s195
          %p192 = scmp.ge.s32.totalorder %s191, 1
          %s196 = sphi %s186, %s186
          %s197 = sphi %s188, %s188
        $region113: #{tpu_custom_call.1} parent=109 // loop_header_branch
          %194 = sbr.rel (%p192) target = $region117
        $region114: #{tpu_custom_call.1} parent=109 // loop_body
          %v198 = vld [vmem:[%s196] sm:%s189]
          %199 = vst [vmem:[%s197] sm:%s189] %v198
        $region115: #{tpu_custom_call.1} parent=109 // loop_footer
          %s195 = sadd.s32 1, %s191
        $region116: #{tpu_custom_call.1} parent=109 // loop_footer_branch
          %190 = sbr.rel target = $region112
        $region117: #{tpu_custom_call.1} parent=109 // loop_exit
          _
      $region110: #{tpu_custom_call.1} parent=94 // pred_fallthru
        _
    $region95: #{tpu_custom_call.1} parent=1 // pred_fallthru
      _
    // Predicated region
    $region96: #{tpu_custom_call.1} parent=1 // pred_check
      %p165 = pneg %p161
    $region97: #{tpu_custom_call.1} parent=1 // pred_check_branch
      %167 = sbr.rel (%p165) target = $region99
    $region98: #{tpu_custom_call.1} parent=1 // pred_region
      %s168 = sshllo.u32 0, 1
      loop: start=0, step=1, limit=1
      $region100: #{tpu_custom_call.1} parent=98 // loop_pre_header
        _
      $region101: #{tpu_custom_call.1} parent=98 // loop_header
        %s170 = sphi 0, %s174
        %p171 = scmp.ge.s32.totalorder %s170, 1
        %s175 = sphi %s157, %s157
        %s176 = sphi %s158, %s158
      $region102: #{tpu_custom_call.1} parent=98 // loop_header_branch
        %173 = sbr.rel (%p171) target = $region106
      $region103: #{tpu_custom_call.1} parent=98 // loop_body
        %v177 = vld [vmem:[%s175] sm:%s168]
        %178 = vst [vmem:[%s176] sm:%s168] %v177
      $region104: #{tpu_custom_call.1} parent=98 // loop_footer
        %s174 = sadd.s32 1, %s170
      $region105: #{tpu_custom_call.1} parent=98 // loop_footer_branch
        %169 = sbr.rel target = $region101
      $region106: #{tpu_custom_call.1} parent=98 // loop_exit
        _
    $region99: #{tpu_custom_call.1} parent=1 // pred_fallthru
      _
    // Predicated region
    $region118: #{tpu_custom_call.1} parent=1 // pred_check
      _
    $region119: #{tpu_custom_call.1} parent=1 // pred_check_branch
      %202 = sbr.rel (0) target = $region121
    $region120: #{tpu_custom_call.1} parent=1 // pred_region
      %203 = vsyncadd %s159, 16
    $region121: #{tpu_custom_call.1} parent=1 // pred_fallthru
      _
    %s204 = sld [smem:[#allocation5 + $0x4]]
    %s205 = scalar_lea.vmem %s1, %s204
    %s206 = scalar_lea.vmem [#allocation2], 4
    %s207 = scalar_lea.sflag [#allocation3], 4
    %p209 = scmp.lt.u32.totalorder 1, 8
    %p210 = pneg %p209
    // Predicated region
    $region122: #{tpu_custom_call.1} parent=1 // pred_check
      _
    $region123: #{tpu_custom_call.1} parent=1 // pred_check_branch
      %212 = sbr.rel (%p209) target = $region125
    $region124: #{tpu_custom_call.1} parent=1 // pred_region
      %s227 = sand.u32 1, 7
      %p228 = scmp.eq.s32.totalorder %s227, 0
      %p229 = pneg %p228
      // Predicated region
      $region137: #{tpu_custom_call.1} parent=124 // pred_check
        _
      $region138: #{tpu_custom_call.1} parent=124 // pred_check_branch
        %231 = sbr.rel (%p228) target = $region140
      $region139: #{tpu_custom_call.1} parent=124 // pred_region
        %s232 = sand.u32 1, 7
        %s233 = ssub.s32 1, %s232
        %s234 = scalar_lea.vmem %s205, %s233
        %s235 = ssub.s32 1, %s232
        %s236 = scalar_lea.vmem %s206, %s235 [#allocation2]
        %s237 = sshllo.u32 0, %s232
        loop: start=0, step=1, limit=1
        $region141: #{tpu_custom_call.1} parent=139 // loop_pre_header
          _
        $region142: #{tpu_custom_call.1} parent=139 // loop_header
          %s239 = sphi 0, %s243
          %p240 = scmp.ge.s32.totalorder %s239, 1
          %s244 = sphi %s234, %s234
          %s245 = sphi %s236, %s236
        $region143: #{tpu_custom_call.1} parent=139 // loop_header_branch
          %242 = sbr.rel (%p240) target = $region147
        $region144: #{tpu_custom_call.1} parent=139 // loop_body
          %v246 = vld [vmem:[%s244] sm:%s237]
          %247 = vst [vmem:[%s245] sm:%s237] %v246
        $region145: #{tpu_custom_call.1} parent=139 // loop_footer
          %s243 = sadd.s32 1, %s239
        $region146: #{tpu_custom_call.1} parent=139 // loop_footer_branch
          %238 = sbr.rel target = $region142
        $region147: #{tpu_custom_call.1} parent=139 // loop_exit
          _
      $region140: #{tpu_custom_call.1} parent=124 // pred_fallthru
        _
    $region125: #{tpu_custom_call.1} parent=1 // pred_fallthru
      _
    // Predicated region
    $region126: #{tpu_custom_call.1} parent=1 // pred_check
      %p213 = pneg %p209
    $region127: #{tpu_custom_call.1} parent=1 // pred_check_branch
      %215 = sbr.rel (%p213) target = $region129
    $region128: #{tpu_custom_call.1} parent=1 // pred_region
      %s216 = sshllo.u32 0, 1
      loop: start=0, step=1, limit=1
      $region130: #{tpu_custom_call.1} parent=128 // loop_pre_header
        _
      $region131: #{tpu_custom_call.1} parent=128 // loop_header
        %s218 = sphi 0, %s222
        %p219 = scmp.ge.s32.totalorder %s218, 1
        %s223 = sphi %s205, %s205
        %s224 = sphi %s206, %s206
      $region132: #{tpu_custom_call.1} parent=128 // loop_header_branch
        %221 = sbr.rel (%p219) target = $region136
      $region133: #{tpu_custom_call.1} parent=128 // loop_body
        %v225 = vld [vmem:[%s223] sm:%s216]
        %226 = vst [vmem:[%s224] sm:%s216] %v225
      $region134: #{tpu_custom_call.1} parent=128 // loop_footer
        %s222 = sadd.s32 1, %s218
      $region135: #{tpu_custom_call.1} parent=128 // loop_footer_branch
        %217 = sbr.rel target = $region131
      $region136: #{tpu_custom_call.1} parent=128 // loop_exit
        _
    $region129: #{tpu_custom_call.1} parent=1 // pred_fallthru
      _
    // Predicated region
    $region148: #{tpu_custom_call.1} parent=1 // pred_check
      _
    $region149: #{tpu_custom_call.1} parent=1 // pred_check_branch
      %250 = sbr.rel (0) target = $region151
    $region150: #{tpu_custom_call.1} parent=1 // pred_region
      %251 = vsyncadd %s207, 16
    $region151: #{tpu_custom_call.1} parent=1 // pred_fallthru
      _
    %s252 = sld [smem:[#allocation5 + $0x5]]
    %s253 = scalar_lea.vmem %s1, %s252
    %s254 = scalar_lea.vmem [#allocation2], 5
    %s255 = scalar_lea.sflag [#allocation3], 5
    %p257 = scmp.lt.u32.totalorder 1, 8
    %p258 = pneg %p257
    // Predicated region
    $region152: #{tpu_custom_call.1} parent=1 // pred_check
      _
    $region153: #{tpu_custom_call.1} parent=1 // pred_check_branch
      %260 = sbr.rel (%p257) target = $region155
    $region154: #{tpu_custom_call.1} parent=1 // pred_region
      %s275 = sand.u32 1, 7
      %p276 = scmp.eq.s32.totalorder %s275, 0
      %p277 = pneg %p276
      // Predicated region
      $region167: #{tpu_custom_call.1} parent=154 // pred_check
        _
      $region168: #{tpu_custom_call.1} parent=154 // pred_check_branch
        %279 = sbr.rel (%p276) target = $region170
      $region169: #{tpu_custom_call.1} parent=154 // pred_region
        %s280 = sand.u32 1, 7
        %s281 = ssub.s32 1, %s280
        %s282 = scalar_lea.vmem %s253, %s281
        %s283 = ssub.s32 1, %s280
        %s284 = scalar_lea.vmem %s254, %s283 [#allocation2]
        %s285 = sshllo.u32 0, %s280
        loop: start=0, step=1, limit=1
        $region171: #{tpu_custom_call.1} parent=169 // loop_pre_header
          _
        $region172: #{tpu_custom_call.1} parent=169 // loop_header
          %s287 = sphi 0, %s291
          %p288 = scmp.ge.s32.totalorder %s287, 1
          %s292 = sphi %s282, %s282
          %s293 = sphi %s284, %s284
        $region173: #{tpu_custom_call.1} parent=169 // loop_header_branch
          %290 = sbr.rel (%p288) target = $region177
        $region174: #{tpu_custom_call.1} parent=169 // loop_body
          %v294 = vld [vmem:[%s292] sm:%s285]
          %295 = vst [vmem:[%s293] sm:%s285] %v294
        $region175: #{tpu_custom_call.1} parent=169 // loop_footer
          %s291 = sadd.s32 1, %s287
        $region176: #{tpu_custom_call.1} parent=169 // loop_footer_branch
          %286 = sbr.rel target = $region172
        $region177: #{tpu_custom_call.1} parent=169 // loop_exit
          _
      $region170: #{tpu_custom_call.1} parent=154 // pred_fallthru
        _
    $region155: #{tpu_custom_call.1} parent=1 // pred_fallthru
      _
    // Predicated region
    $region156: #{tpu_custom_call.1} parent=1 // pred_check
      %p261 = pneg %p257
    $region157: #{tpu_custom_call.1} parent=1 // pred_check_branch
      %263 = sbr.rel (%p261) target = $region159
    $region158: #{tpu_custom_call.1} parent=1 // pred_region
      %s264 = sshllo.u32 0, 1
      loop: start=0, step=1, limit=1
      $region160: #{tpu_custom_call.1} parent=158 // loop_pre_header
        _
      $region161: #{tpu_custom_call.1} parent=158 // loop_header
        %s266 = sphi 0, %s270
        %p267 = scmp.ge.s32.totalorder %s266, 1
        %s271 = sphi %s253, %s253
        %s272 = sphi %s254, %s254
      $region162: #{tpu_custom_call.1} parent=158 // loop_header_branch
        %269 = sbr.rel (%p267) target = $region166
      $region163: #{tpu_custom_call.1} parent=158 // loop_body
        %v273 = vld [vmem:[%s271] sm:%s264]
        %274 = vst [vmem:[%s272] sm:%s264] %v273
      $region164: #{tpu_custom_call.1} parent=158 // loop_footer
        %s270 = sadd.s32 1, %s266
      $region165: #{tpu_custom_call.1} parent=158 // loop_footer_branch
        %265 = sbr.rel target = $region161
      $region166: #{tpu_custom_call.1} parent=158 // loop_exit
        _
    $region159: #{tpu_custom_call.1} parent=1 // pred_fallthru
      _
    // Predicated region
    $region178: #{tpu_custom_call.1} parent=1 // pred_check
      _
    $region179: #{tpu_custom_call.1} parent=1 // pred_check_branch
      %298 = sbr.rel (0) target = $region181
    $region180: #{tpu_custom_call.1} parent=1 // pred_region
      %299 = vsyncadd %s255, 16
    $region181: #{tpu_custom_call.1} parent=1 // pred_fallthru
      _
    %s300 = sld [smem:[#allocation5 + $0x6]]
    %s301 = scalar_lea.vmem %s1, %s300
    %s302 = scalar_lea.vmem [#allocation2], 6
    %s303 = scalar_lea.sflag [#allocation3], 6
    %p305 = scmp.lt.u32.totalorder 1, 8
    %p306 = pneg %p305
    // Predicated region
    $region182: #{tpu_custom_call.1} parent=1 // pred_check
      _
    $region183: #{tpu_custom_call.1} parent=1 // pred_check_branch
      %308 = sbr.rel (%p305) target = $region185
    $region184: #{tpu_custom_call.1} parent=1 // pred_region
      %s323 = sand.u32 1, 7
      %p324 = scmp.eq.s32.totalorder %s323, 0
      %p325 = pneg %p324
      // Predicated region
      $region197: #{tpu_custom_call.1} parent=184 // pred_check
        _
      $region198: #{tpu_custom_call.1} parent=184 // pred_check_branch
        %327 = sbr.rel (%p324) target = $region200
      $region199: #{tpu_custom_call.1} parent=184 // pred_region
        %s328 = sand.u32 1, 7
        %s329 = ssub.s32 1, %s328
        %s330 = scalar_lea.vmem %s301, %s329
        %s331 = ssub.s32 1, %s328
        %s332 = scalar_lea.vmem %s302, %s331 [#allocation2]
        %s333 = sshllo.u32 0, %s328
        loop: start=0, step=1, limit=1
        $region201: #{tpu_custom_call.1} parent=199 // loop_pre_header
          _
        $region202: #{tpu_custom_call.1} parent=199 // loop_header
          %s335 = sphi 0, %s339
          %p336 = scmp.ge.s32.totalorder %s335, 1
          %s340 = sphi %s330, %s330
          %s341 = sphi %s332, %s332
        $region203: #{tpu_custom_call.1} parent=199 // loop_header_branch
          %338 = sbr.rel (%p336) target = $region207
        $region204: #{tpu_custom_call.1} parent=199 // loop_body
          %v342 = vld [vmem:[%s340] sm:%s333]
          %343 = vst [vmem:[%s341] sm:%s333] %v342
        $region205: #{tpu_custom_call.1} parent=199 // loop_footer
          %s339 = sadd.s32 1, %s335
        $region206: #{tpu_custom_call.1} parent=199 // loop_footer_branch
          %334 = sbr.rel target = $region202
        $region207: #{tpu_custom_call.1} parent=199 // loop_exit
          _
      $region200: #{tpu_custom_call.1} parent=184 // pred_fallthru
        _
    $region185: #{tpu_custom_call.1} parent=1 // pred_fallthru
      _
    // Predicated region
    $region186: #{tpu_custom_call.1} parent=1 // pred_check
      %p309 = pneg %p305
    $region187: #{tpu_custom_call.1} parent=1 // pred_check_branch
      %311 = sbr.rel (%p309) target = $region189
    $region188: #{tpu_custom_call.1} parent=1 // pred_region
      %s312 = sshllo.u32 0, 1
      loop: start=0, step=1, limit=1
      $region190: #{tpu_custom_call.1} parent=188 // loop_pre_header
        _
      $region191: #{tpu_custom_call.1} parent=188 // loop_header
        %s314 = sphi 0, %s318
        %p315 = scmp.ge.s32.totalorder %s314, 1
        %s319 = sphi %s301, %s301
        %s320 = sphi %s302, %s302
      $region192: #{tpu_custom_call.1} parent=188 // loop_header_branch
        %317 = sbr.rel (%p315) target = $region196
      $region193: #{tpu_custom_call.1} parent=188 // loop_body
        %v321 = vld [vmem:[%s319] sm:%s312]
        %322 = vst [vmem:[%s320] sm:%s312] %v321
      $region194: #{tpu_custom_call.1} parent=188 // loop_footer
        %s318 = sadd.s32 1, %s314
      $region195: #{tpu_custom_call.1} parent=188 // loop_footer_branch
        %313 = sbr.rel target = $region191
      $region196: #{tpu_custom_call.1} parent=188 // loop_exit
        _
    $region189: #{tpu_custom_call.1} parent=1 // pred_fallthru
      _
    // Predicated region
    $region208: #{tpu_custom_call.1} parent=1 // pred_check
      _
    $region209: #{tpu_custom_call.1} parent=1 // pred_check_branch
      %346 = sbr.rel (0) target = $region211
    $region210: #{tpu_custom_call.1} parent=1 // pred_region
      %347 = vsyncadd %s303, 16
    $region211: #{tpu_custom_call.1} parent=1 // pred_fallthru
      _
    %s348 = sld [smem:[#allocation5 + $0x7]]
    %s349 = scalar_lea.vmem %s1, %s348
    %s350 = scalar_lea.vmem [#allocation2], 7
    %s351 = scalar_lea.sflag [#allocation3], 7
    %p353 = scmp.lt.u32.totalorder 1, 8
    %p354 = pneg %p353
    // Predicated region
    $region212: #{tpu_custom_call.1} parent=1 // pred_check
      _
    $region213: #{tpu_custom_call.1} parent=1 // pred_check_branch
      %356 = sbr.rel (%p353) target = $region215
    $region214: #{tpu_custom_call.1} parent=1 // pred_region
      %s371 = sand.u32 1, 7
      %p372 = scmp.eq.s32.totalorder %s371, 0
      %p373 = pneg %p372
      // Predicated region
      $region227: #{tpu_custom_call.1} parent=214 // pred_check
        _
      $region228: #{tpu_custom_call.1} parent=214 // pred_check_branch
        %375 = sbr.rel (%p372) target = $region230
      $region229: #{tpu_custom_call.1} parent=214 // pred_region
        %s376 = sand.u32 1, 7
        %s377 = ssub.s32 1, %s376
        %s378 = scalar_lea.vmem %s349, %s377
        %s379 = ssub.s32 1, %s376
        %s380 = scalar_lea.vmem %s350, %s379 [#allocation2]
        %s381 = sshllo.u32 0, %s376
        loop: start=0, step=1, limit=1
        $region231: #{tpu_custom_call.1} parent=229 // loop_pre_header
          _
        $region232: #{tpu_custom_call.1} parent=229 // loop_header
          %s383 = sphi 0, %s387
          %p384 = scmp.ge.s32.totalorder %s383, 1
          %s388 = sphi %s378, %s378
          %s389 = sphi %s380, %s380
        $region233: #{tpu_custom_call.1} parent=229 // loop_header_branch
          %386 = sbr.rel (%p384) target = $region237
        $region234: #{tpu_custom_call.1} parent=229 // loop_body
          %v390 = vld [vmem:[%s388] sm:%s381]
          %391 = vst [vmem:[%s389] sm:%s381] %v390
        $region235: #{tpu_custom_call.1} parent=229 // loop_footer
          %s387 = sadd.s32 1, %s383
        $region236: #{tpu_custom_call.1} parent=229 // loop_footer_branch
          %382 = sbr.rel target = $region232
        $region237: #{tpu_custom_call.1} parent=229 // loop_exit
          _
      $region230: #{tpu_custom_call.1} parent=214 // pred_fallthru
        _
    $region215: #{tpu_custom_call.1} parent=1 // pred_fallthru
      _
    // Predicated region
    $region216: #{tpu_custom_call.1} parent=1 // pred_check
      %p357 = pneg %p353
    $region217: #{tpu_custom_call.1} parent=1 // pred_check_branch
      %359 = sbr.rel (%p357) target = $region219
    $region218: #{tpu_custom_call.1} parent=1 // pred_region
      %s360 = sshllo.u32 0, 1
      loop: start=0, step=1, limit=1
      $region220: #{tpu_custom_call.1} parent=218 // loop_pre_header
        _
      $region221: #{tpu_custom_call.1} parent=218 // loop_header
        %s362 = sphi 0, %s366
        %p363 = scmp.ge.s32.totalorder %s362, 1
        %s367 = sphi %s349, %s349
        %s368 = sphi %s350, %s350
      $region222: #{tpu_custom_call.1} parent=218 // loop_header_branch
        %365 = sbr.rel (%p363) target = $region226
      $region223: #{tpu_custom_call.1} parent=218 // loop_body
        %v369 = vld [vmem:[%s367] sm:%s360]
        %370 = vst [vmem:[%s368] sm:%s360] %v369
      $region224: #{tpu_custom_call.1} parent=218 // loop_footer
        %s366 = sadd.s32 1, %s362
      $region225: #{tpu_custom_call.1} parent=218 // loop_footer_branch
        %361 = sbr.rel target = $region221
      $region226: #{tpu_custom_call.1} parent=218 // loop_exit
        _
    $region219: #{tpu_custom_call.1} parent=1 // pred_fallthru
      _
    // Predicated region
    $region238: #{tpu_custom_call.1} parent=1 // pred_check
      _
    $region239: #{tpu_custom_call.1} parent=1 // pred_check_branch
      %394 = sbr.rel (0) target = $region241
    $region240: #{tpu_custom_call.1} parent=1 // pred_region
      %395 = vsyncadd %s351, 16
    $region241: #{tpu_custom_call.1} parent=1 // pred_fallthru
      _
    %s396 = smul.u32 1, 1
    %s397 = sshll.u32 %s396, 4
    %398 = dma.done [#allocation3], %s397
    %s399 = sshll.u32 %s396, 4
    %400 = dma.done %s63, %s399
    %s401 = sshll.u32 %s396, 4
    %402 = dma.done %s111, %s401
    %s403 = sshll.u32 %s396, 4
    %404 = dma.done %s159, %s403
    %s405 = sshll.u32 %s396, 4
    %406 = dma.done %s207, %s405
    %s407 = sshll.u32 %s396, 4
    %408 = dma.done %s255, %s407
    %s409 = sshll.u32 %s396, 4
    %410 = dma.done %s303, %s409
    %s411 = sshll.u32 %s396, 4
    %412 = dma.done %s351, %s411
    %v413 = vld [vmem:[#allocation2] sm:$0xff]
    %vm414 = vcmask 261120
    %415 = vst.msk [vmem:[#allocation6] sm:$0xff] %vm414, %v413
    // Predicated region
    $region242: #{tpu_custom_call.1} parent=1 // pred_check
      _
    $region243: #{tpu_custom_call.1} parent=1 // pred_check_branch
      %417 = sbr.rel (0) target = $region245
    $region244: #{tpu_custom_call.1} parent=1 // pred_region
      %s419 = ssub.s32 128, 128
      %420 = vsyncadd [#allocation7], %s419
      %s422 = sshll.u32 [#allocation6], 4
      %s423 = int_to_ptr.vmem [resolvable:$true] %s422
      %425 = dma.vmem_to_hbm [thread:$0]  %s423, 128, %s2, [#allocation7]
    $region245: #{tpu_custom_call.1} parent=1 // pred_fallthru
      _
    // Predicated region
    $region246: #{tpu_custom_call.1} parent=1 // pred_check
      _
    $region247: #{tpu_custom_call.1} parent=1 // pred_check_branch
      %427 = sbr.rel (0) target = $region249
    $region248: #{tpu_custom_call.1} parent=1 // pred_region
      %428 = dma.done [#allocation7], 128
    $region249: #{tpu_custom_call.1} parent=1 // pred_fallthru
      _
    %429 = vsyncpa [#allocation7], 1
  %430 = vsyncmov [#allocation3]
  %s431 = vpop.sfrf %430
  %p432 = scmp.eq.s32.totalorder %s431, 0
  %p433 = pneg %p432
  %435 = shalt.err (%p433)
  %s436 = scalar_lea.sflag [#allocation3], 1
  %437 = vsyncmov %s436
  %s438 = vpop.sfrf %437
  %p439 = scmp.eq.s32.totalorder %s438, 0
  %p440 = pneg %p439
  %442 = shalt.err (%p440)
  %s443 = scalar_lea.sflag [#allocation3], 2
  %444 = vsyncmov %s443
  %s445 = vpop.sfrf %444
  %p446 = scmp.eq.s32.totalorder %s445, 0
  %p447 = pneg %p446
  %449 = shalt.err (%p447)
  %s450 = scalar_lea.sflag [#allocation3], 3
  %451 = vsyncmov %s450
  %s452 = vpop.sfrf %451
  %p453 = scmp.eq.s32.totalorder %s452, 0
  %p454 = pneg %p453
  %456 = shalt.err (%p454)
  %s457 = scalar_lea.sflag [#allocation3], 4
  %458 = vsyncmov %s457
  %s459 = vpop.sfrf %458
  %p460 = scmp.eq.s32.totalorder %s459, 0
  %p461 = pneg %p460
  %463 = shalt.err (%p461)
  %s464 = scalar_lea.sflag [#allocation3], 5
  %465 = vsyncmov %s464
  %s466 = vpop.sfrf %465
  %p467 = scmp.eq.s32.totalorder %s466, 0
  %p468 = pneg %p467
  %470 = shalt.err (%p468)
  %s471 = scalar_lea.sflag [#allocation3], 6
  %472 = vsyncmov %s471
  %s473 = vpop.sfrf %472
  %p474 = scmp.eq.s32.totalorder %s473, 0
  %p475 = pneg %p474
  %477 = shalt.err (%p475)
  %s478 = scalar_lea.sflag [#allocation3], 7
  %479 = vsyncmov %s478
  %s480 = vpop.sfrf %479
  %p481 = scmp.eq.s32.totalorder %s480, 0
  %p482 = pneg %p481
  %484 = shalt.err (%p482)

</llo_original>
